<compile_context>
chip_gen: v7x
topology: tpu7x:2x2x1
jax: 0.10.0
libtpu: 0.0.40
codegen_flags: <defaults>
</compile_context>

<pallas_src>
import functools

import jax
import jax.numpy as jnp
from jax.experimental import pallas as pl
from jax.experimental.pallas import tpu as pltpu


def _round_up(x: int, m: int) -> int:
    return (x + m - 1) // m * m


def _cdiv(a: int, b: int) -> int:
    return (a + b - 1) // b


def _pick_tile(n: int, d: int, itemsize: int, *, t_max: int = 512,
               step_overhead_elems: int = 128 * 1024,
               vmem_budget: int = 12 * 1024 * 1024) -> int:
    """Square tile size (multiple of 128) minimizing padded-triangle work +
    per-grid-step overhead, under a v5e-safe VMEM budget."""
    n128 = _round_up(max(n, 1), 128)
    t_hi = max(128, min(t_max, n128))
    best = None
    for t in range(128, t_hi + 1, 128):
        # 2 operands x 2 pipeline buffers + ~3 live (T, T) f32 tile temporaries
        vmem = 4 * t * d * itemsize + 12 * t * t
        if vmem > vmem_budget and t != 128:
            continue
        gm = _cdiv(n, t)
        n_tri = gm * (gm + 1) // 2
        cost = n_tri * (t * t + step_overhead_elems)
        key = (cost, -t)
        if best is None or key < best[0]:
            best = (key, t)
    return best[1]


def _class_sep_margin_kernel(ti_ref, tj_ref, xr_ref, xct_ref, cmr_ref, cmc_ref,
                             out_ref, *, margin: float):
    """One packed-triangle (T, T) tile of the pairwise margin loss."""
    s = pl.program_id(0)

    # (T, D) @ (D, T) on the MXU, f32 accumulation.
    sim = jnp.dot(xr_ref[...], xct_ref[...],
                  preferred_element_type=jnp.float32)
    dist = 1.0 - sim

    # targets rebuilt in-kernel from O(N) class ids (broadcast compare).
    same = cmr_ref[...] == cmc_ref[...]          # (T, 1) == (1, T) -> (T, T)

    # targets are exactly 0/1: t*d + (1-t)*clamp(m-d, 0) == where(t, d, relu(m-d))
    loss = jnp.where(same, dist, jnp.maximum(margin - dist, 0.0))

    # Diagonal tiles counted once, off-diagonal tiles stand in for their mirror.
    w = jnp.where(ti_ref[s] == tj_ref[s], jnp.float32(1.0), jnp.float32(2.0))
    total = w * jnp.sum(loss)

    # Single lane-aligned (8, 128) partial per grid step (independent blocks ->
    # the grid axis can be "parallel").
    row = jax.lax.broadcasted_iota(jnp.int32, (8, 128), 0)
    col = jax.lax.broadcasted_iota(jnp.int32, (8, 128), 1)
    out_ref[...] = jnp.where((row == 0) & (col == 0), total, jnp.float32(0.0))


def class_separation_loss_margin(bottleneck, class_map, *, margin: float = 1.1,
                                 matmul_dtype=jnp.bfloat16, t_max: int = 512,
                                 eps: float = 1e-8) -> jax.Array:
    """Pallas implementation of ClassSeparationLossMargin.forward."""
    x = jnp.asarray(bottleneck, jnp.float32)
    cm = jnp.asarray(class_map, jnp.int32)
    n, d = x.shape
    assert cm.shape == (n,), "class_map must have one id per bottleneck row"

    # Cosine normalization once in XLA.  NOTE: nn.CosineSimilarity clamps the
    # per-pair ||a||*||b|| by eps; we clamp each row norm independently, which
    # only differs for (near-)zero vectors.
    norm = jnp.sqrt(jnp.sum(x * x, axis=-1, keepdims=True))
    xn = (x / jnp.maximum(norm, eps)).astype(matmul_dtype)

    itemsize = jnp.dtype(matmul_dtype).itemsize
    t = _pick_tile(n, d, itemsize, t_max=t_max)
    np_pad = _round_up(n, t)
    gm = np_pad // t
    n_tri = gm * (gm + 1) // 2

    # Pad rows with zero vectors.  Pad class ids with two DISTINCT sentinels
    # strictly below every real id, so every pad-involving pair has targets=0,
    # sim=0, dist=1 -> loss exactly relu(margin - 1); no in-kernel mask needed.
    xr = jnp.pad(xn, ((0, np_pad - n), (0, 0)))
    xct = xr.T                                    # one XLA transpose, MXU-native
    if np_pad > n:
        sent = jnp.min(cm) - 1
        pad_r = jnp.broadcast_to(sent, (np_pad - n,)).astype(jnp.int32)
        pad_c = jnp.broadcast_to(sent - 1, (np_pad - n,)).astype(jnp.int32)
        cm_r = jnp.concatenate([cm, pad_r]).reshape(np_pad, 1)
        cm_c = jnp.concatenate([cm, pad_c]).reshape(1, np_pad)
    else:
        cm_r = cm.reshape(np_pad, 1)
        cm_c = cm.reshape(1, np_pad)

    # Packed upper-triangle tile list, column-major (j outer) so consecutive
    # steps reuse the same (D, T) column block (Pallas elides repeat DMAs).
    ti_l, tj_l = [], []
    for j in range(gm):
        for i in range(j + 1):
            ti_l.append(i)
            tj_l.append(j)
    ti = jnp.asarray(ti_l, jnp.int32)
    tj = jnp.asarray(tj_l, jnp.int32)

    kernel = functools.partial(_class_sep_margin_kernel, margin=float(margin))

    partials = pl.pallas_call(
        kernel,
        out_shape=jax.ShapeDtypeStruct((n_tri * 8, 128), jnp.float32),
        grid_spec=pltpu.PrefetchScalarGridSpec(
            num_scalar_prefetch=2,
            grid=(n_tri,),
            in_specs=[
                pl.BlockSpec((t, d), lambda s, tir, tjr: (tir[s], 0)),  # rows
                pl.BlockSpec((d, t), lambda s, tir, tjr: (0, tjr[s])),  # cols^T
                pl.BlockSpec((t, 1), lambda s, tir, tjr: (tir[s], 0)),  # row ids
                pl.BlockSpec((1, t), lambda s, tir, tjr: (0, tjr[s])),  # col ids
            ],
            out_specs=pl.BlockSpec((8, 128), lambda s, tir, tjr: (s, 0)),
        ),
        compiler_params=pltpu.CompilerParams(
            # every grid step writes an independent output block -> shard the
            # packed-triangle steps across both TensorCores on v7x.
            dimension_semantics=("parallel",),
        ),
    )(ti, tj, xr, xct, cm_r, cm_c)

    # Closed-form pad contribution (all pad-involving pairs are targets=0,
    # dist=1); the weighted triangle sum equals the full padded-matrix sum.
    pad_corr = float(max(float(margin) - 1.0, 0.0)) * (np_pad * np_pad - n * n)
    return ((jnp.sum(partials) - pad_corr) / jnp.float32(n * n)).astype(jnp.float32)


def _reference_loss(bottleneck, class_map, margin=1.1, eps=1e-8):
    """Pure-JAX reference mirroring the PyTorch module (f32, HIGHEST precision)."""
    x = jnp.asarray(bottleneck, jnp.float32)
    cm = jnp.asarray(class_map, jnp.int32)
    norm = jnp.sqrt(jnp.sum(x * x, axis=-1, keepdims=True))
    xn = x / jnp.maximum(norm, eps)
    sim = jnp.matmul(xn, xn.T, precision=jax.lax.Precision.HIGHEST)
    dist = 1.0 - sim
    tgt = (cm[:, None] == cm[None, :]).astype(jnp.float32)
    loss = tgt * dist + (1.0 - tgt) * jnp.maximum(margin - dist, 0.0)
    return jnp.mean(loss)


if __name__ == "__main__":
    key = jax.random.PRNGKey(0)
    k1, k2, k3 = jax.random.split(key, 3)

    # --- Case 1: small shape implied by the module (16 items, D=32) ----------
    class_map1 = jnp.asarray([0, 0, 1, 1, 2, 2, 3, 3, 4, 4, 5, 5, 6, 6, 7, 7],
                             jnp.int32)
    x1 = jax.random.normal(k1, (16, 32), jnp.float32)
    ref1 = _reference_loss(x1, class_map1)
    loss1 = jax.block_until_ready(class_separation_loss_margin(x1, class_map1))
    assert jnp.allclose(loss1, ref1, rtol=5e-2, atol=2e-2), (loss1, ref1)
    loss1_f32 = jax.block_until_ready(
        class_separation_loss_margin(x1, class_map1, matmul_dtype=jnp.float32))
    assert jnp.allclose(loss1_f32, ref1, rtol=2e-3, atol=2e-3), (loss1_f32, ref1)

    # --- Case 2: padded problem, default bf16 operands ------------------------
    n2, d2 = 600, 64
    class_map2 = jax.random.randint(k2, (n2,), 0, 10, jnp.int32)
    x2 = jax.random.normal(k3, (n2, d2), jnp.float32)
    ref2 = _reference_loss(x2, class_map2)
    loss2 = jax.block_until_ready(class_separation_loss_margin(x2, class_map2))
    assert jnp.allclose(loss2, ref2, rtol=5e-2, atol=2e-2), (loss2, ref2)
    loss2_f32 = jax.block_until_ready(
        class_separation_loss_margin(x2, class_map2, matmul_dtype=jnp.float32))
    assert jnp.allclose(loss2_f32, ref2, rtol=2e-3, atol=2e-3), (loss2_f32, ref2)

    # --- Case 3: force a multi-tile packed-triangle grid (T=128, 15 steps) ----
    loss3 = jax.block_until_ready(
        class_separation_loss_margin(x2, class_map2, t_max=128,
                                     matmul_dtype=jnp.float32))
    assert jnp.allclose(loss3, ref2, rtol=2e-3, atol=2e-3), (loss3, ref2)

    print("KERNEL_OK")
</pallas_src>

<mosaic_0001>
module attributes {stable_mosaic.version = 11 : i64} {
  func.func @_class_sep_margin_kernel(%arg0: i32, %arg1: memref<1xi32, #tpu.memory_space<smem>>, %arg2: memref<1xi32, #tpu.memory_space<smem>>, %arg3: memref<128x32xbf16, #tpu.memory_space<vmem>>, %arg4: memref<32x128xbf16, #tpu.memory_space<vmem>>, %arg5: memref<128x1xi32, #tpu.memory_space<vmem>>, %arg6: memref<1x128xi32, #tpu.memory_space<vmem>>, %arg7: memref<8x128xf32, #tpu.memory_space<vmem>>) attributes {dimension_semantics = [#tpu.dimension_semantics<parallel>], iteration_bounds = array<i64: 1>, scalar_prefetch = 2 : i64, scratch_operands = 0 : i64, tpu.core_type = #tpu.core_type<tc>, window_params = [{transform_indices = @transform_0, window_bounds = array<i64: 128, 32>}, {transform_indices = @transform_1, window_bounds = array<i64: 32, 128>}, {transform_indices = @transform_2, window_bounds = array<i64: 128, 1>}, {transform_indices = @transform_3, window_bounds = array<i64: 1, 128>}, {transform_indices = @transform_4, window_bounds = array<i64: 8, 128>}]} {
    %c0 = arith.constant 0 : index
    %c0_0 = arith.constant 0 : index
    %0 = vector.load %arg3[%c0, %c0_0] : memref<128x32xbf16, #tpu.memory_space<vmem>>, vector<128x32xbf16>
    %c0_1 = arith.constant 0 : index
    %c0_2 = arith.constant 0 : index
    %1 = vector.load %arg4[%c0_1, %c0_2] : memref<32x128xbf16, #tpu.memory_space<vmem>>, vector<32x128xbf16>
    %cst = arith.constant dense<0.000000e+00> : vector<128x128xf32>
    %2 = tpu.matmul %0, %1, %cst {dimension_numbers = #tpu.dot_dimension_numbers<[1], [0], [0], [1], [0, 0, 1, 1], [], []>} : vector<128x32xbf16>, vector<32x128xbf16>, vector<128x128xf32> -> vector<128x128xf32>
    %cst_3 = arith.constant 1.000000e+00 : f32
    %3 = vector.broadcast %cst_3 : f32 to vector<128x128xf32>
    %4 = arith.subf %3, %2 : vector<128x128xf32>
    %c0_4 = arith.constant 0 : index
    %c0_5 = arith.constant 0 : index
    %5 = vector.load %arg5[%c0_4, %c0_5] : memref<128x1xi32, #tpu.memory_space<vmem>>, vector<128x1xi32>
    %c0_6 = arith.constant 0 : index
    %c0_7 = arith.constant 0 : index
    %6 = vector.load %arg6[%c0_6, %c0_7] : memref<1x128xi32, #tpu.memory_space<vmem>>, vector<1x128xi32>
    %7 = vector.broadcast %5 : vector<128x1xi32> to vector<128x128xi32>
    %8 = vector.broadcast %6 : vector<1x128xi32> to vector<128x128xi32>
    %9 = arith.cmpi eq, %7, %8 : vector<128x128xi32>
    %cst_8 = arith.constant 1.100000e+00 : f32
    %10 = vector.broadcast %cst_8 : f32 to vector<128x128xf32>
    %11 = arith.subf %10, %4 : vector<128x128xf32>
    %cst_9 = arith.constant 0.000000e+00 : f32
    %12 = vector.broadcast %cst_9 : f32 to vector<128x128xf32>
    %13 = arith.maximumf %11, %12 : vector<128x128xf32>
    %14 = arith.select %9, %4, %13 : vector<128x128xi1>, vector<128x128xf32>
    %15 = arith.index_cast %arg0 : i32 to index
    %16 = memref.load %arg1[%15] : memref<1xi32, #tpu.memory_space<smem>>
    %17 = arith.index_cast %arg0 : i32 to index
    %18 = memref.load %arg2[%17] : memref<1xi32, #tpu.memory_space<smem>>
    %19 = arith.cmpi eq, %16, %18 : i32
    %cst_10 = arith.constant 1.000000e+00 : f32
    %cst_11 = arith.constant 2.000000e+00 : f32
    %20 = arith.select %19, %cst_10, %cst_11 : f32
    %21 = vector.shape_cast %14 : vector<128x128xf32> to vector<1x128x128xf32>
    %cst_12 = arith.constant dense<0.000000e+00> : vector<1xf32>
    %22 = vector.multi_reduction <add>, %21, %cst_12 [1, 2] : vector<1x128x128xf32> to vector<1xf32>
    %23 = vector.shape_cast %22 : vector<1xf32> to vector<1x1x1xf32>
    %24 = vector.extract %23[0, 0, 0] : f32 from vector<1x1x1xf32>
    %25 = arith.mulf %20, %24 : f32
    %26 = tpu.iota {dimensions = array<i32: 0>} : vector<8x128xi32>
    %27 = tpu.iota {dimensions = array<i32: 1>} : vector<8x128xi32>
    %c0_i32 = arith.constant 0 : i32
    %28 = vector.broadcast %c0_i32 : i32 to vector<8x128xi32>
    %29 = arith.cmpi eq, %26, %28 : vector<8x128xi32>
    %c0_i32_13 = arith.constant 0 : i32
    %30 = vector.broadcast %c0_i32_13 : i32 to vector<8x128xi32>
    %31 = arith.cmpi eq, %27, %30 : vector<8x128xi32>
    %32 = arith.andi %29, %31 : vector<8x128xi1>
    %cst_14 = arith.constant 0.000000e+00 : f32
    %33 = vector.broadcast %25 : f32 to vector<8x128xf32>
    %34 = vector.broadcast %cst_14 : f32 to vector<8x128xf32>
    %35 = arith.select %32, %33, %34 : vector<8x128xi1>, vector<8x128xf32>
    %c0_15 = arith.constant 0 : index
    %c0_16 = arith.constant 0 : index
    %36 = vector.load %arg7[%c0_15, %c0_16] : memref<8x128xf32, #tpu.memory_space<vmem>>, vector<8x128xf32>
    tpu.vector_store %arg7[%c0_15, %c0_16], %35 {strides = array<i32>} : memref<8x128xf32, #tpu.memory_space<vmem>>, vector<8x128xf32>,
    return
  }
  func.func @transform_0(%arg0: i32, %arg1: memref<1xi32, #tpu.memory_space<smem>>, %arg2: memref<1xi32, #tpu.memory_space<smem>>) -> (i32, i32) {
    %0 = arith.index_cast %arg0 : i32 to index
    %1 = memref.load %arg1[%0] : memref<1xi32, #tpu.memory_space<smem>>
    %c0_i32 = arith.constant 0 : i32
    %c0_i32_0 = arith.constant 0 : i32
    return %1, %c0_i32 : i32, i32
  }
  func.func @transform_1(%arg0: i32, %arg1: memref<1xi32, #tpu.memory_space<smem>>, %arg2: memref<1xi32, #tpu.memory_space<smem>>) -> (i32, i32) {
    %0 = arith.index_cast %arg0 : i32 to index
    %1 = memref.load %arg2[%0] : memref<1xi32, #tpu.memory_space<smem>>
    %c0_i32 = arith.constant 0 : i32
    %c0_i32_0 = arith.constant 0 : i32
    return %c0_i32, %1 : i32, i32
  }
  func.func @transform_2(%arg0: i32, %arg1: memref<1xi32, #tpu.memory_space<smem>>, %arg2: memref<1xi32, #tpu.memory_space<smem>>) -> (i32, i32) {
    %0 = arith.index_cast %arg0 : i32 to index
    %1 = memref.load %arg1[%0] : memref<1xi32, #tpu.memory_space<smem>>
    %c0_i32 = arith.constant 0 : i32
    %c0_i32_0 = arith.constant 0 : i32
    return %1, %c0_i32 : i32, i32
  }
  func.func @transform_3(%arg0: i32, %arg1: memref<1xi32, #tpu.memory_space<smem>>, %arg2: memref<1xi32, #tpu.memory_space<smem>>) -> (i32, i32) {
    %0 = arith.index_cast %arg0 : i32 to index
    %1 = memref.load %arg2[%0] : memref<1xi32, #tpu.memory_space<smem>>
    %c0_i32 = arith.constant 0 : i32
    %c0_i32_0 = arith.constant 0 : i32
    return %c0_i32, %1 : i32, i32
  }
  func.func @transform_4(%arg0: i32, %arg1: memref<1xi32, #tpu.memory_space<smem>>, %arg2: memref<1xi32, #tpu.memory_space<smem>>) -> (i32, i32) {
    %c0_i32 = arith.constant 0 : i32
    %c0_i32_0 = arith.constant 0 : i32
    return %arg0, %c0_i32 : i32, i32
  }
}

</mosaic_0001>

<llo_original>
// kernel: tpu_custom_call.1
$region0: #{tpu_custom_call.1}
  #allocation0 [shape = 'u32[]', space=smem, size = 0x4, offset = 0x4, fixed_abs, tag = 'smem constant byte address 0x4 - core index']
  #allocation1 [shape = 'u32[144,128]{1,0:T(1,128)}', space=vmem, size = 0x12000, scoped, tag = 'internal scratch']
  #allocation2 [shape = 's32[1]{0}', space=sflag, size = 0x4, scoped, tag = 'scoped memory for tpu_custom_call.1']
  #allocation3 [shape = 's32[1]{0:T(128)S(6)}', space=smem, size = 0x200, scoped, tag = 'prefetched SMEM operand 0']
  #allocation4 [shape = 's32[1]{0:T(128)S(6)}', space=smem, size = 0x200, scoped, tag = 'prefetched SMEM operand 1']
  %s0 = inlined_call_operand.<no memory space> [shape: s32[1], index: 0, kind: input, shape index: {}]
  %s1 = inlined_call_operand.<no memory space> [shape: s32[1], index: 1, kind: input, shape index: {}]
  %s2 = inlined_call_operand.vmem [shape: bf16[128,32], index: 2, kind: input, shape index: {}]
  %s3 = inlined_call_operand.vmem [shape: bf16[32,128], index: 3, kind: input, shape index: {}]
  %s4 = inlined_call_operand.vmem [shape: s32[128,1], index: 4, kind: input, shape index: {}]
  %s5 = inlined_call_operand.vmem [shape: s32[1,128], index: 5, kind: input, shape index: {}]
  %s6 = inlined_call_operand.hbm [shape: f32[8,128], index: 6, kind: output, shape index: {}]
  %s7 = sld [smem:[#allocation0]]
  $region26: #{tpu_custom_call.1} parent=0
    _
  %s9 = ssub.s32 1, %s7
  %s10 = scalar_select 0, %s9, %s7
  %11 = sst [smem:[#allocation3]] %s0
  %12 = sst [smem:[#allocation4]] %s1
  $region1: #{tpu_custom_call.1} parent=0
    #allocation5 [shape = 'u8[4096]{0}', space=vmem, size = 0x1000, scoped, tag = 'output window, operand 0, single buffered']
    #allocation6 [shape = 's32[1]{0}', space=sflag, size = 0x4, scoped, tag = 'scoped memory for tpu_custom_call.1']
    %13 = vsyncpa [#allocation6], 0
    // Predicated region
    $region2: #{tpu_custom_call.1} parent=1 // pred_check
      _
    $region3: #{tpu_custom_call.1} parent=1 // pred_check_branch
      %15 = sbr.rel (0) target = $region5
    $region4: #{tpu_custom_call.1} parent=1 // pred_region
      %s16 = sld [smem:[#allocation3]]
      %s17 = smul.u32 16, %s16
      %p18 = scmp.lt.s32.totalorder %s17, 15
      %s19 = scalar_select %p18, %s17, 15
      %s20 = smul.addr %s19, 4
      %s21 = scalar_lea.vmem %s2, %s20
      %s22 = sld [smem:[#allocation3]]
      %s23 = smul.u32 16, %s22
    $region5: #{tpu_custom_call.1} parent=1 // pred_fallthru
      _
    // Predicated region
    $region6: #{tpu_custom_call.1} parent=1 // pred_check
      _
    $region7: #{tpu_custom_call.1} parent=1 // pred_check_branch
      %25 = sbr.rel (0) target = $region9
    $region8: #{tpu_custom_call.1} parent=1 // pred_region
      %s26 = sld [smem:[#allocation4]]
      %p27 = scmp.lt.s32.totalorder %s26, 0
      %s28 = scalar_select %p27, %s26, 0
      %s29 = smul.addr %s28, 4
      %s30 = scalar_lea.vmem %s3, %s29
      %s31 = sld [smem:[#allocation4]]
    $region9: #{tpu_custom_call.1} parent=1 // pred_fallthru
      _
    // Predicated region
    $region10: #{tpu_custom_call.1} parent=1 // pred_check
      _
    $region11: #{tpu_custom_call.1} parent=1 // pred_check_branch
      %33 = sbr.rel (0) target = $region13
    $region12: #{tpu_custom_call.1} parent=1 // pred_region
      %s34 = sld [smem:[#allocation3]]
      %s35 = smul.u32 16, %s34
      %p36 = scmp.lt.s32.totalorder %s35, 15
      %s37 = scalar_select %p36, %s35, 15
      %s38 = smul.addr %s37, 8
      %s39 = scalar_lea.vmem %s4, %s38
      %s40 = sld [smem:[#allocation3]]
      %s41 = smul.u32 16, %s40
    $region13: #{tpu_custom_call.1} parent=1 // pred_fallthru
      _
    // Predicated region
    $region14: #{tpu_custom_call.1} parent=1 // pred_check
      _
    $region15: #{tpu_custom_call.1} parent=1 // pred_check_branch
      %43 = sbr.rel (0) target = $region17
    $region16: #{tpu_custom_call.1} parent=1 // pred_region
      %s44 = sld [smem:[#allocation4]]
      %p45 = scmp.lt.s32.totalorder %s44, 0
      %s46 = scalar_select %p45, %s44, 0
      %s47 = scalar_lea.vmem %s5, %s46
      %s48 = sld [smem:[#allocation4]]
    $region17: #{tpu_custom_call.1} parent=1 // pred_fallthru
      _
    %s49 = sld [smem:[#allocation3]]
    %s50 = smul.u32 16, %s49
    %p51 = scmp.lt.s32.totalorder %s50, 15
    %s52 = scalar_select %p51, %s50, 15
    %s53 = smul.addr %s52, 4
    %s54 = scalar_lea.vmem %s2, %s53
    %s55 = sld [smem:[#allocation4]]
    %p56 = scmp.lt.s32.totalorder %s55, 0
    %s57 = scalar_select %p56, %s55, 0
    %s58 = smul.addr %s57, 4
    %s59 = scalar_lea.vmem %s3, %s58
    %s60 = sld [smem:[#allocation3]]
    %s61 = smul.u32 16, %s60
    %p62 = scmp.lt.s32.totalorder %s61, 15
    %s63 = scalar_select %p62, %s61, 15
    %s64 = smul.addr %s63, 8
    %s65 = scalar_lea.vmem %s4, %s64
    %s66 = sld [smem:[#allocation4]]
    %p67 = scmp.lt.s32.totalorder %s66, 0
    %s68 = scalar_select %p67, %s66, 0
    %s69 = scalar_lea.vmem %s5, %s68
    %s70 = sld [smem:[#allocation3]]
    %s71 = smul.u32 16, %s70
    %p72 = scmp.lt.s32.totalorder %s71, 15
    %s73 = scalar_select %p72, %s71, 15
    %s74 = smul.addr %s73, 4
    %s75 = scalar_lea.vmem %s2, %s74
    %s76 = sld [smem:[#allocation3]]
    %s77 = smul.u32 16, %s76
    %s78 = sld [smem:[#allocation4]]
    %p79 = scmp.lt.s32.totalorder %s78, 0
    %s80 = scalar_select %p79, %s78, 0
    %s81 = smul.addr %s80, 4
    %s82 = scalar_lea.vmem %s3, %s81
    %s83 = sld [smem:[#allocation4]]
    %s84 = sld [smem:[#allocation3]]
    %s85 = smul.u32 16, %s84
    %p86 = scmp.lt.s32.totalorder %s85, 15
    %s87 = scalar_select %p86, %s85, 15
    %s88 = smul.addr %s87, 8
    %s89 = scalar_lea.vmem %s4, %s88
    %s90 = sld [smem:[#allocation3]]
    %s91 = smul.u32 16, %s90
    %s92 = sld [smem:[#allocation4]]
    %p93 = scmp.lt.s32.totalorder %s92, 0
    %s94 = scalar_select %p93, %s92, 0
    %s95 = scalar_lea.vmem %s5, %s94
    %s96 = sld [smem:[#allocation4]]
    %v98 = vld [vmem:[%s75] sm:$0xf]
    %v99 = vld [vmem:[%s75 + $0x4] sm:$0xf]
    %v100 = vld [vmem:[%s75 + $0x8] sm:$0xf]
    %v101 = vld [vmem:[%s75 + $0xc] sm:$0xf]
    %v102 = vld [vmem:[%s75 + $0x10] sm:$0xf]
    %v103 = vld [vmem:[%s75 + $0x14] sm:$0xf]
    %v104 = vld [vmem:[%s75 + $0x18] sm:$0xf]
    %v105 = vld [vmem:[%s75 + $0x1c] sm:$0xf]
    %v106 = vld [vmem:[%s75 + $0x20] sm:$0xf]
    %v107 = vld [vmem:[%s75 + $0x24] sm:$0xf]
    %v108 = vld [vmem:[%s75 + $0x28] sm:$0xf]
    %v109 = vld [vmem:[%s75 + $0x2c] sm:$0xf]
    %v110 = vld [vmem:[%s75 + $0x30] sm:$0xf]
    %v111 = vld [vmem:[%s75 + $0x34] sm:$0xf]
    %v112 = vld [vmem:[%s75 + $0x38] sm:$0xf]
    %v113 = vld [vmem:[%s75 + $0x3c] sm:$0xf]
    %v114 = vld [vmem:[%s82] sm:$0xf]
    %v115 = vld [vmem:[%s82 + $0x4] sm:$0xf]
    %v116 = vld [vmem:[%s82 + $0x8] sm:$0xf]
    %v117 = vld [vmem:[%s82 + $0xc] sm:$0xf]
    %v134 = vunpack.c.l.b16 %v98
    %v135 = vunpack.c.l.b16 %v99
    %v136 = vunpack.c.l.b16 %v100
    %v137 = vunpack.c.l.b16 %v101
    %v138 = vunpack.c.l.b16 %v102
    %v139 = vunpack.c.l.b16 %v103
    %v140 = vunpack.c.l.b16 %v104
    %v141 = vunpack.c.l.b16 %v105
    %v142 = vunpack.c.l.b16 %v106
    %v143 = vunpack.c.l.b16 %v107
    %v144 = vunpack.c.l.b16 %v108
    %v145 = vunpack.c.l.b16 %v109
    %v146 = vunpack.c.l.b16 %v110
    %v147 = vunpack.c.l.b16 %v111
    %v148 = vunpack.c.l.b16 %v112
    %v149 = vunpack.c.l.b16 %v113
    %v150 = vpack.c.b16 %v135, %v134
    %v151 = vpack.c.b16 %v137, %v136
    %v152 = vpack.c.b16 %v139, %v138
    %v153 = vpack.c.b16 %v141, %v140
    %v154 = vpack.c.b16 %v143, %v142
    %v155 = vpack.c.b16 %v145, %v144
    %v156 = vpack.c.b16 %v147, %v146
    %v157 = vpack.c.b16 %v149, %v148
    %v162 = vunpack.c.l.b16 %v114
    %v163 = vunpack.c.l.b16 %v115
    %v164 = vunpack.c.l.b16 %v116
    %v165 = vunpack.c.l.b16 %v117
    %v166 = vpack.c.b16 %v163, %v162
    %v167 = vpack.c.b16 %v165, %v164
    %vm170 = vcmask 261120
    %v172 = vsel %vm170, %v150, 0
    %v175 = vsel %vm170, %v151, 0
    %v178 = vsel %vm170, %v152, 0
    %v181 = vsel %vm170, %v153, 0
    %v184 = vsel %vm170, %v154, 0
    %v187 = vsel %vm170, %v155, 0
    %v190 = vsel %vm170, %v156, 0
    %v193 = vsel %vm170, %v157, 0
    %195 = vmatprep.subr.bf16.mxu0 0
    %196 = vmatpush1.bf16.msra.mxu0 %v166
    %197 = vmatprep.subr.bf16.mxu0 0
    %198 = vmatpush1.bf16.msra.mxu0 %v167
    %199 = vmatprep.subr.bf16.mxu0 0
    %200 = vmatpush1.bf16.msra.mxu0 0
    %201 = vmatprep.subr.bf16.mxu0 0
    %202 = vmatpush1.bf16.msra.mxu0 0
    %203 = vmatprep.subr.bf16.mxu0 0
    %204 = vmatpush1.bf16.msra.mxu0 0
    %205 = vmatprep.subr.bf16.mxu0 0
    %206 = vmatpush1.bf16.msra.mxu0 0
    %207 = vmatprep.subr.bf16.mxu0 0
    %208 = vmatpush1.bf16.msra.mxu0 0
    %209 = vmatprep.subr.bf16.mxu0 0
    %210 = vmatpush1.bf16.msra.mxu0 0
    %211 = vmatprep.subr.bf16.mxu0 0
    %212 = vmatpush1.bf16.msra.mxu0 0
    %213 = vmatprep.subr.bf16.mxu0 0
    %214 = vmatpush1.bf16.msra.mxu0 0
    %215 = vmatprep.subr.bf16.mxu0 0
    %216 = vmatpush1.bf16.msra.mxu0 0
    %217 = vmatprep.subr.bf16.mxu0 0
    %218 = vmatpush1.bf16.msra.mxu0 0
    %219 = vmatprep.subr.bf16.mxu0 0
    %220 = vmatpush1.bf16.msra.mxu0 0
    %221 = vmatprep.subr.bf16.mxu0 0
    %222 = vmatpush1.bf16.msra.mxu0 0
    %223 = vmatprep.subr.bf16.mxu0 0
    %224 = vmatpush1.bf16.msra.mxu0 0
    %225 = vmatprep.subr.bf16.mxu0 0
    %226 = vmatpush1.bf16.msra.mxu0 0
    %227 = vmatprep.mubr.bf16.mxu0 0
    %228 = vmatmul.mubr.bf16.gmra.mrb[0].mxu0 %v172
    %v229 = vpop.f32.mrb[0].mxu0
    %v230 = vadd.f32 0.0, %v229
    %v231 = vpop.f32.mrb[0].mxu0
    %v232 = vpop.f32.mrb[0].mxu0
    %v233 = vadd.f32 0.0, %v232
    %v234 = vpop.f32.mrb[0].mxu0
    %235 = vmatprep.mubr.bf16.mxu0 0
    %236 = vmatmul.mubr.bf16.gmra.mrb[0].mxu0 %v175
    %v237 = vpop.f32.mrb[0].mxu0
    %v238 = vadd.f32 0.0, %v237
    %v239 = vpop.f32.mrb[0].mxu0
    %v240 = vpop.f32.mrb[0].mxu0
    %v241 = vadd.f32 0.0, %v240
    %v242 = vpop.f32.mrb[0].mxu0
    %243 = vmatprep.mubr.bf16.mxu0 0
    %244 = vmatmul.mubr.bf16.gmra.mrb[0].mxu0 %v178
    %v245 = vpop.f32.mrb[0].mxu0
    %v246 = vadd.f32 0.0, %v245
    %v247 = vpop.f32.mrb[0].mxu0
    %v248 = vpop.f32.mrb[0].mxu0
    %v249 = vadd.f32 0.0, %v248
    %v250 = vpop.f32.mrb[0].mxu0
    %251 = vmatprep.mubr.bf16.mxu0 0
    %252 = vmatmul.mubr.bf16.gmra.mrb[0].mxu0 %v181
    %v253 = vpop.f32.mrb[0].mxu0
    %v254 = vadd.f32 0.0, %v253
    %v255 = vpop.f32.mrb[0].mxu0
    %v256 = vpop.f32.mrb[0].mxu0
    %v257 = vadd.f32 0.0, %v256
    %v258 = vpop.f32.mrb[0].mxu0
    %259 = vmatprep.mubr.bf16.mxu0 0
    %260 = vmatmul.mubr.bf16.gmra.mrb[0].mxu0 %v184
    %v261 = vpop.f32.mrb[0].mxu0
    %v262 = vadd.f32 0.0, %v261
    %v263 = vpop.f32.mrb[0].mxu0
    %v264 = vpop.f32.mrb[0].mxu0
    %v265 = vadd.f32 0.0, %v264
    %v266 = vpop.f32.mrb[0].mxu0
    %267 = vmatprep.mubr.bf16.mxu0 0
    %268 = vmatmul.mubr.bf16.gmra.mrb[0].mxu0 %v187
    %v269 = vpop.f32.mrb[0].mxu0
    %v270 = vadd.f32 0.0, %v269
    %v271 = vpop.f32.mrb[0].mxu0
    %v272 = vpop.f32.mrb[0].mxu0
    %v273 = vadd.f32 0.0, %v272
    %v274 = vpop.f32.mrb[0].mxu0
    %275 = vmatprep.mubr.bf16.mxu0 0
    %276 = vmatmul.mubr.bf16.gmra.mrb[0].mxu0 %v190
    %v277 = vpop.f32.mrb[0].mxu0
    %v278 = vadd.f32 0.0, %v277
    %v279 = vpop.f32.mrb[0].mxu0
    %v280 = vpop.f32.mrb[0].mxu0
    %v281 = vadd.f32 0.0, %v280
    %v282 = vpop.f32.mrb[0].mxu0
    %283 = vmatprep.mubr.bf16.mxu0 0
    %284 = vmatmul.mubr.bf16.gmra.mrb[0].mxu0 %v193
    %v285 = vpop.f32.mrb[0].mxu0
    %v286 = vadd.f32 0.0, %v285
    %v287 = vpop.f32.mrb[0].mxu0
    %v288 = vpop.f32.mrb[0].mxu0
    %v289 = vadd.f32 0.0, %v288
    %v290 = vpop.f32.mrb[0].mxu0
    %291 = vdwg.mxu0
    %v292 = vsub.f32 1.0, %v230
    %v293 = vsub.f32 1.0, %v233
    %v294 = vsub.f32 1.0, %v238
    %v295 = vsub.f32 1.0, %v241
    %v296 = vsub.f32 1.0, %v246
    %v297 = vsub.f32 1.0, %v249
    %v298 = vsub.f32 1.0, %v254
    %v299 = vsub.f32 1.0, %v257
    %v300 = vsub.f32 1.0, %v262
    %v301 = vsub.f32 1.0, %v265
    %v302 = vsub.f32 1.0, %v270
    %v303 = vsub.f32 1.0, %v273
    %v304 = vsub.f32 1.0, %v278
    %v305 = vsub.f32 1.0, %v281
    %v306 = vsub.f32 1.0, %v286
    %v307 = vsub.f32 1.0, %v289
    %v308 = vld [vmem:[%s89] sm:$0xff]
    %v309 = vld [vmem:[%s89 + $0x8] sm:$0xff]
    %v310 = vld [vmem:[%s89 + $0x10] sm:$0xff]
    %v311 = vld [vmem:[%s89 + $0x18] sm:$0xff]
    %v312 = vld [vmem:[%s89 + $0x20] sm:$0xff]
    %v313 = vld [vmem:[%s89 + $0x28] sm:$0xff]
    %v314 = vld [vmem:[%s89 + $0x30] sm:$0xff]
    %v315 = vld [vmem:[%s89 + $0x38] sm:$0xff]
    %v316 = vld [vmem:[%s89 + $0x40] sm:$0xff]
    %v317 = vld [vmem:[%s89 + $0x48] sm:$0xff]
    %v318 = vld [vmem:[%s89 + $0x50] sm:$0xff]
    %v319 = vld [vmem:[%s89 + $0x58] sm:$0xff]
    %v320 = vld [vmem:[%s89 + $0x60] sm:$0xff]
    %v321 = vld [vmem:[%s89 + $0x68] sm:$0xff]
    %v322 = vld [vmem:[%s89 + $0x70] sm:$0xff]
    %v323 = vld [vmem:[%s89 + $0x78] sm:$0xff]
    %v324 = vld [vmem:[%s95] sm:$0x1]
    %325 = vset.pattern.permute.xlu0 0
    %326 = vperm.xlu0 %325, %v308
    %v327 = vpop.permute.xlu0 %326
    %328 = vset.pattern.permute.xlu0 0
    %329 = vperm.xlu0 %328, %v309
    %v330 = vpop.permute.xlu0 %329
    %331 = vset.pattern.permute.xlu0 0
    %332 = vperm.xlu0 %331, %v310
    %v333 = vpop.permute.xlu0 %332
    %334 = vset.pattern.permute.xlu0 0
    %335 = vperm.xlu0 %334, %v311
    %v336 = vpop.permute.xlu0 %335
    %337 = vset.pattern.permute.xlu0 0
    %338 = vperm.xlu0 %337, %v312
    %v339 = vpop.permute.xlu0 %338
    %340 = vset.pattern.permute.xlu0 0
    %341 = vperm.xlu0 %340, %v313
    %v342 = vpop.permute.xlu0 %341
    %343 = vset.pattern.permute.xlu0 0
    %344 = vperm.xlu0 %343, %v314
    %v345 = vpop.permute.xlu0 %344
    %346 = vset.pattern.permute.xlu0 0
    %347 = vperm.xlu0 %346, %v315
    %v348 = vpop.permute.xlu0 %347
    %349 = vset.pattern.permute.xlu0 0
    %350 = vperm.xlu0 %349, %v316
    %v351 = vpop.permute.xlu0 %350
    %352 = vset.pattern.permute.xlu0 0
    %353 = vperm.xlu0 %352, %v317
    %v354 = vpop.permute.xlu0 %353
    %355 = vset.pattern.permute.xlu0 0
    %356 = vperm.xlu0 %355, %v318
    %v357 = vpop.permute.xlu0 %356
    %358 = vset.pattern.permute.xlu0 0
    %359 = vperm.xlu0 %358, %v319
    %v360 = vpop.permute.xlu0 %359
    %361 = vset.pattern.permute.xlu0 0
    %362 = vperm.xlu0 %361, %v320
    %v363 = vpop.permute.xlu0 %362
    %364 = vset.pattern.permute.xlu0 0
    %365 = vperm.xlu0 %364, %v321
    %v366 = vpop.permute.xlu0 %365
    %367 = vset.pattern.permute.xlu0 0
    %368 = vperm.xlu0 %367, %v322
    %v369 = vpop.permute.xlu0 %368
    %370 = vset.pattern.permute.xlu0 0
    %371 = vperm.xlu0 %370, %v323
    %v372 = vpop.permute.xlu0 %371
    %v373 = vlaneseq
    %v374 = vshrl.u32 %v373, 7
    %v375 = vsub.s32 0, %v374
    %v376 = vrot.slane %v324, %v375
    %vm377 = vcmp.eq.s32.totalorder %v327, %v376
    %vm378 = vcmp.eq.s32.totalorder %v330, %v376
    %vm379 = vcmp.eq.s32.totalorder %v333, %v376
    %vm380 = vcmp.eq.s32.totalorder %v336, %v376
    %vm381 = vcmp.eq.s32.totalorder %v339, %v376
    %vm382 = vcmp.eq.s32.totalorder %v342, %v376
    %vm383 = vcmp.eq.s32.totalorder %v345, %v376
    %vm384 = vcmp.eq.s32.totalorder %v348, %v376
    %vm385 = vcmp.eq.s32.totalorder %v351, %v376
    %vm386 = vcmp.eq.s32.totalorder %v354, %v376
    %vm387 = vcmp.eq.s32.totalorder %v357, %v376
    %vm388 = vcmp.eq.s32.totalorder %v360, %v376
    %vm389 = vcmp.eq.s32.totalorder %v363, %v376
    %vm390 = vcmp.eq.s32.totalorder %v366, %v376
    %vm391 = vcmp.eq.s32.totalorder %v369, %v376
    %vm392 = vcmp.eq.s32.totalorder %v372, %v376
    %v393 = vsub.f32 1.1, %v292
    %v394 = vsub.f32 1.1, %v293
    %v395 = vsub.f32 1.1, %v294
    %v396 = vsub.f32 1.1, %v295
    %v397 = vsub.f32 1.1, %v296
    %v398 = vsub.f32 1.1, %v297
    %v399 = vsub.f32 1.1, %v298
    %v400 = vsub.f32 1.1, %v299
    %v401 = vsub.f32 1.1, %v300
    %v402 = vsub.f32 1.1, %v301
    %v403 = vsub.f32 1.1, %v302
    %v404 = vsub.f32 1.1, %v303
    %v405 = vsub.f32 1.1, %v304
    %v406 = vsub.f32 1.1, %v305
    %v407 = vsub.f32 1.1, %v306
    %v408 = vsub.f32 1.1, %v307
    %v409 = vmax.f32 %v393, 0.0
    %v410 = vmax.f32 %v394, 0.0
    %v411 = vmax.f32 %v395, 0.0
    %v412 = vmax.f32 %v396, 0.0
    %v413 = vmax.f32 %v397, 0.0
    %v414 = vmax.f32 %v398, 0.0
    %v415 = vmax.f32 %v399, 0.0
    %v416 = vmax.f32 %v400, 0.0
    %v417 = vmax.f32 %v401, 0.0
    %v418 = vmax.f32 %v402, 0.0
    %v419 = vmax.f32 %v403, 0.0
    %v420 = vmax.f32 %v404, 0.0
    %v421 = vmax.f32 %v405, 0.0
    %v422 = vmax.f32 %v406, 0.0
    %v423 = vmax.f32 %v407, 0.0
    %v424 = vmax.f32 %v408, 0.0
    %v425 = vsel %vm377, %v292, %v409
    %v426 = vsel %vm378, %v293, %v410
    %v427 = vsel %vm379, %v294, %v411
    %v428 = vsel %vm380, %v295, %v412
    %v429 = vsel %vm381, %v296, %v413
    %v430 = vsel %vm382, %v297, %v414
    %v431 = vsel %vm383, %v298, %v415
    %v432 = vsel %vm384, %v299, %v416
    %v433 = vsel %vm385, %v300, %v417
    %v434 = vsel %vm386, %v301, %v418
    %v435 = vsel %vm387, %v302, %v419
    %v436 = vsel %vm388, %v303, %v420
    %v437 = vsel %vm389, %v304, %v421
    %v438 = vsel %vm390, %v305, %v422
    %v439 = vsel %vm391, %v306, %v423
    %v440 = vsel %vm392, %v307, %v424
    %s441 = sld [smem:[#allocation3]]
    %s442 = sld [smem:[#allocation4]]
    %p443 = scmp.eq.s32.totalorder %s441, %s442
    %s444 = scalar_select %p443, 1.0, 2.0
    %v445 = vadd.f32 %v425, %v426
    %v446 = vadd.f32 %v445, %v427
    %v447 = vadd.f32 %v446, %v428
    %v448 = vadd.f32 %v447, %v429
    %v449 = vadd.f32 %v448, %v430
    %v450 = vadd.f32 %v449, %v431
    %v451 = vadd.f32 %v450, %v432
    %v452 = vadd.f32 %v451, %v433
    %v453 = vadd.f32 %v452, %v434
    %v454 = vadd.f32 %v453, %v435
    %v455 = vadd.f32 %v454, %v436
    %v456 = vadd.f32 %v455, %v437
    %v457 = vadd.f32 %v456, %v438
    %v458 = vadd.f32 %v457, %v439
    %v459 = vadd.f32 %v458, %v440
    %460 = vadd.xlane.f32.xlu0 %v459
    %v461 = vpop.xlane.xlu0 %460
    %v462 = vrot.slane %v461, 4
    %v463 = vadd.f32 %v461, %v462
    %v464 = vrot.slane %v463, 2
    %v465 = vadd.f32 %v463, %v464
    %v466 = vrot.slane %v465, 1
    %v467 = vadd.f32 %v465, %v466
    %s468 = vtos %v467
    %s469 = smul.f32 %s444, %s468
    %v470 = vlaneseq
    %v471 = vshrl.u32 %v470, 7
    %v472 = vlaneseq
    %v473 = vand.u32 %v472, 127
    %vm474 = vcmp.eq.s32.totalorder %v471, 0
    %vm475 = vcmp.eq.s32.totalorder %v473, 0
    %vm476 = vmand %vm474, %vm475
    %v477 = vstv %s469
    %v478 = vsel %vm476, %v477, 0.0
    %479 = vst [vmem:[#allocation5] sm:$0xff] %v478
    // Predicated region
    $region18: #{tpu_custom_call.1} parent=1 // pred_check
      _
    $region19: #{tpu_custom_call.1} parent=1 // pred_check_branch
      %481 = sbr.rel (0) target = $region21
    $region20: #{tpu_custom_call.1} parent=1 // pred_region
      %s483 = ssub.s32 128, 128
      %484 = vsyncadd [#allocation6], %s483
      %s486 = sshll.u32 [#allocation5], 4
      %s487 = int_to_ptr.vmem [resolvable:$true] %s486
      %489 = dma.vmem_to_hbm [thread:$0]  %s487, 128, %s6, [#allocation6]
    $region21: #{tpu_custom_call.1} parent=1 // pred_fallthru
      _
    // Predicated region
    $region22: #{tpu_custom_call.1} parent=1 // pred_check
      _
    $region23: #{tpu_custom_call.1} parent=1 // pred_check_branch
      %491 = sbr.rel (0) target = $region25
    $region24: #{tpu_custom_call.1} parent=1 // pred_region
      %492 = dma.done [#allocation6], 128
    $region25: #{tpu_custom_call.1} parent=1 // pred_fallthru
      _
    %493 = vsyncpa [#allocation6], 1

</llo_original>
